<compile_context>
chip_gen: v6e
topology: v6e:2x2x1
jax: 0.10.0
libtpu: 0.0.40
codegen_flags: <defaults>
</compile_context>

<pallas_src>
import jax
import jax.numpy as jnp
from jax import lax
from jax.experimental import pallas as pl
from jax.experimental.pallas import tpu as pltpu
import numpy as np

PAD_ID = 0  # args.pretrain_type == 'bert' branch of UPF_dgcn.forward


def _round_up(x, m):
    return -(-x // m) * m


def _make_kernel(seq_len, sub_rows):
    """grid = (row_tiles [parallel], V_tiles [arbitrary, reduction])."""

    def kernel(tok_ref, emb_ref, w_ref, b_ref, cls_ref):
        k = pl.program_id(1)
        nk = pl.num_programs(1)
        tm = tok_ref.shape[0]
        tv = emb_ref.shape[0]
        v0 = k * tv

        @pl.when(k == 0)
        def _():
            # Output block is resident across k (index_map ignores k); it doubles
            # as the f32 embedding-sum accumulator — no extra scratch needed.
            cls_ref[...] = jnp.zeros_like(cls_ref)

        # Hoisted once per grid step: unshifted lane iota for this V tile.
        lane_iota = lax.broadcasted_iota(jnp.int32, (1, tv), 1)

        def row_block(s, carry):
            r0 = pl.multiple_of(s * sub_rows, sub_rows)
            # Vreg-resident int32 histogram for this row sub-block.
            cnt = jnp.zeros((sub_rows, tv), jnp.int32)
            # L is static and small: fully unrolled per-position histogram update.
            for l in range(seq_len):
                col = tok_ref[pl.ds(r0, sub_rows), pl.ds(l, 1)]            # (SUB, 1)
                # Fold amask (token != pad) into the histogram and shift the
                # V-tile offset onto the tokens (not onto a (tm, L, tv) iota).
                col = jnp.where(col == PAD_ID, jnp.int32(-1), col) - v0
                cnt = cnt + (col == lane_iota).astype(jnp.int32)
            # (SUB, tv) x (tv, D) on the MXU (bf16 operands, f32 accumulation;
            # counts are small integers -> exact in bf16), accumulated into the
            # resident output block.
            cls_ref[pl.ds(r0, sub_rows), :] += jnp.dot(
                cnt.astype(jnp.bfloat16), emb_ref[...],
                preferred_element_type=jnp.float32)
            return carry

        lax.fori_loop(0, tm // sub_rows, row_block, 0)

        @pl.when(k == nk - 1)
        def _():
            tokens = tok_ref[...]
            amask = (tokens != PAD_ID).astype(jnp.float32)                 # (tm, L)
            tok_cnt = jnp.sum(amask, axis=-1, keepdims=True)              # (tm, 1)
            inv_cnt = pl.reciprocal(jnp.maximum(tok_cnt, 1.0), approx=True)
            pooled = cls_ref[...] * inv_cnt                                # (tm, D)
            cls_ref[...] = jnp.dot(pooled.astype(jnp.bfloat16), w_ref[...],
                                   preferred_element_type=jnp.float32) + b_ref[...]

    return kernel


def upf_dgcn_forward(post_tokens_id, emb, w, b):
    """post_tokens_id: (B, N, L) int32; emb: (V, D); w: (D, D); b: (D,) or (1, D)."""
    B, N, L = post_tokens_id.shape
    V, D = emb.shape

    # Parameters become bf16 MXU operands (activations cast in-kernel).
    emb_bf = emb.astype(jnp.bfloat16)
    w_bf = w.astype(jnp.bfloat16)
    b2 = jnp.reshape(b, (1, D)).astype(jnp.float32)

    # ---- row tiling: flatten (B, N) so the MXU M dim is filled across batch
    # AND posts; aim for >= 2 row tiles when M is large enough (v7x: 2 TCs).
    M = B * N
    if M <= 16:
        tm = _round_up(M, 8)
    elif M <= 512:
        tm = min(256, _round_up(-(-M // 2), 8))
    else:
        tm = 256
    M_pad = _round_up(M, tm)

    tokens2d = post_tokens_id.reshape(M, L).astype(jnp.int32)
    if M_pad != M:
        tokens2d = jnp.pad(tokens2d, ((0, M_pad - M), (0, 0)),
                           constant_values=PAD_ID)

    # ---- vocab tiling: pad V to a multiple of 256 so the contraction depth
    # always fills the MXU and the table streams in fixed (256, D) bf16 blocks
    # (safe on v7x's smaller VMEM; padded rows are zero and never match a token).
    tv = 256
    V_pad = _round_up(V, tv)
    if V_pad != V:
        emb_bf = jnp.pad(emb_bf, ((0, V_pad - V), (0, 0)))

    # Rows per vreg-resident histogram sub-block ((SUB, tv) int32 <= 16 vregs).
    sub_rows = max(d for d in (64, 32, 16, 8) if tm % d == 0)

    grid = (M_pad // tm, V_pad // tv)

    # Explicit scoped-VMEM budget from the chosen tiles (double-buffered inputs
    # and output), with headroom, capped well under v7x's 64 MiB physical VMEM.
    vmem_need = (2 * tm * L * 4 + 2 * tv * D * 2 + D * D * 2 + D * 4
                 + 2 * tm * D * 4)
    vmem_limit = int(min(48 << 20, max(3 * vmem_need, 16 << 20)))

    cls_rows = pl.pallas_call(
        _make_kernel(L, sub_rows),
        out_shape=jax.ShapeDtypeStruct((M_pad, D), jnp.float32),
        grid_spec=pltpu.PrefetchScalarGridSpec(
            num_scalar_prefetch=0,
            grid=grid,
            in_specs=[
                pl.BlockSpec((tm, L), lambda i, k: (i, 0)),   # token ids
                pl.BlockSpec((tv, D), lambda i, k: (k, 0)),   # emb V-tile (reduction)
                pl.BlockSpec((D, D), lambda i, k: (0, 0)),    # linear weight
                pl.BlockSpec((1, D), lambda i, k: (0, 0)),    # linear bias
            ],
            out_specs=pl.BlockSpec((tm, D), lambda i, k: (i, 0)),
        ),
        compiler_params=pltpu.CompilerParams(
            dimension_semantics=("parallel", "arbitrary"),
            vmem_limit_bytes=vmem_limit),
    )(tokens2d, emb_bf, w_bf, b2)

    cls = cls_rows[:M].reshape(B, N, D)

    # pmask / c_node are trivial O(N*D) reductions -> wrapper, so the kernel's
    # only output is the lane-dense (M, D) cls slab (no masked partial stores).
    amask = (post_tokens_id != PAD_ID).astype(jnp.float32)            # (B, N, L)
    pmask = (amask.sum(-1) > 0).astype(jnp.float32)                   # (B, N)
    # Matches the module exactly (unguarded divide by pmask.sum, as in PyTorch).
    c_node = ((cls * pmask[..., None]).sum(axis=1, keepdims=True)
              / pmask.sum(-1)[:, None, None])                         # (B, 1, D)

    # TODO(synk): Multi_DGCN (producing logit1..4, l0_attr, rs) is not defined
    # in the provided source, so it cannot be translated; we return its inputs
    # (cls_token, c_node, pmask) instead of faking its outputs.
    return cls, c_node, pmask


def _reference(tokens, emb, w, b):
    """Pure-JAX reference of the same math (mirrors the kernel's bf16 rounding
    of the MXU operands so the comparison is meaningful)."""
    amask = (tokens != PAD_ID).astype(jnp.float32)
    pmask = (amask.sum(-1) > 0).astype(jnp.float32)
    emb_bf = emb.astype(jnp.bfloat16).astype(jnp.float32)
    w_bf = w.astype(jnp.bfloat16).astype(jnp.float32)
    onehot = jax.nn.one_hot(tokens, emb.shape[0], dtype=jnp.float32) * amask[..., None]
    counts = onehot.sum(2)                                            # (B, N, V)
    emb_sum = jnp.einsum('bnv,vd->bnd', counts, emb_bf)
    pooled = emb_sum / jnp.maximum(amask.sum(-1, keepdims=True), 1.0)
    pooled = pooled.astype(jnp.bfloat16).astype(jnp.float32)
    cls = pooled @ w_bf + jnp.reshape(b, (1, 1, -1))
    c_node = (cls * pmask[..., None]).sum(1, keepdims=True) / \
        pmask.sum(-1)[:, None, None]
    return cls, c_node, pmask


if __name__ == "__main__":
    # batch, max_post, max_len, vocab, d_model (small but lane-friendly D)
    B, N, L, V, D = 2, 4, 16, 2048, 128

    key = jax.random.PRNGKey(0)
    k_tok, k_emb, k_w, k_b = jax.random.split(key, 4)

    # deterministic example token ids with padding structure
    tokens = jax.random.randint(k_tok, (B, N, L), 1, V).astype(jnp.int32)
    tokens = tokens.at[:, :, L // 2:].set(PAD_ID)   # pad the tail of each post
    tokens = tokens.at[:, -1, :].set(PAD_ID)        # one fully padded post

    # deterministic synthetic parameters (stand-in encoder weights)
    emb = (jax.random.normal(k_emb, (V, D)) * 0.02).astype(jnp.float32)
    w = (jax.random.normal(k_w, (D, D)) * 0.1).astype(jnp.float32)
    b = (jax.random.normal(k_b, (1, D)) * 0.01).astype(jnp.float32)

    cls, c_node, pmask = jax.block_until_ready(
        upf_dgcn_forward(tokens, emb, w, b))

    ref_cls, ref_cnode, ref_pmask = _reference(tokens, emb, w, b)
    # bf16 MXU operands + approx reciprocal -> moderate tolerances
    np.testing.assert_allclose(np.asarray(cls), np.asarray(ref_cls),
                               rtol=2e-2, atol=1e-3)
    np.testing.assert_allclose(np.asarray(c_node), np.asarray(ref_cnode),
                               rtol=2e-2, atol=1e-3)
    np.testing.assert_allclose(np.asarray(pmask), np.asarray(ref_pmask),
                               rtol=0, atol=0)

    print("KERNEL_OK")
</pallas_src>

<mosaic_0001>
module attributes {stable_mosaic.version = 11 : i64} {
  func.func @kernel(%arg0: i32, %arg1: i32, %arg2: memref<8x16xi32, #tpu.memory_space<vmem>>, %arg3: memref<256x128xbf16, #tpu.memory_space<vmem>>, %arg4: memref<128x128xbf16, #tpu.memory_space<vmem>>, %arg5: memref<1x128xf32, #tpu.memory_space<vmem>>, %arg6: memref<8x128xf32, #tpu.memory_space<vmem>>) attributes {dimension_semantics = [#tpu.dimension_semantics<parallel>, #tpu.dimension_semantics<arbitrary>], iteration_bounds = array<i64: 1, 8>, scalar_prefetch = 0 : i64, scratch_operands = 0 : i64, tpu.core_type = #tpu.core_type<tc>, window_params = [{transform_indices = @transform_0, window_bounds = array<i64: 8, 16>}, {transform_indices = @transform_1, window_bounds = array<i64: 256, 128>}, {pipeline_mode = #tpu.pipeline_mode<synchronous>, transform_indices = @transform_2, window_bounds = array<i64: 128, 128>}, {pipeline_mode = #tpu.pipeline_mode<synchronous>, transform_indices = @transform_3, window_bounds = array<i64: 1, 128>}, {transform_indices = @transform_4, window_bounds = array<i64: 8, 128>}]} {
    %c256_i32 = arith.constant 256 : i32
    %0 = arith.muli %arg1, %c256_i32 : i32
    %c0_i32 = arith.constant 0 : i32
    %1 = arith.cmpi eq, %arg1, %c0_i32 : i32
    %2 = arith.extui %1 : i1 to i32
    %c0_i32_0 = arith.constant 0 : i32
    %3 = arith.cmpi ne, %2, %c0_i32_0 : i32
    scf.if %3 {
      %cst_39 = arith.constant 0.000000e+00 : f32
      %227 = vector.broadcast %cst_39 : f32 to vector<8x128xf32>
      %c0_40 = arith.constant 0 : index
      %c0_41 = arith.constant 0 : index
      %228 = vector.load %arg6[%c0_40, %c0_41] : memref<8x128xf32, #tpu.memory_space<vmem>>, vector<8x128xf32>
      tpu.vector_store %arg6[%c0_40, %c0_41], %227 {strides = array<i32>} : memref<8x128xf32, #tpu.memory_space<vmem>>, vector<8x128xf32>,
    } else {
    }
    %4 = tpu.iota {dimensions = array<i32: 1>} : vector<1x256xi32>
    %c0_i32_1 = arith.constant 0 : i32
    %c8_i32 = arith.constant 8 : i32
    %5 = arith.muli %c0_i32_1, %c8_i32 : i32
    %6 = tpu.assume_multiple %5, 8 : i32
    %c0_i32_2 = arith.constant 0 : i32
    %7 = vector.broadcast %c0_i32_2 : i32 to vector<8x256xi32>
    %8 = arith.index_cast %6 : i32 to index
    %c0 = arith.constant 0 : index
    %9 = vector.load %arg2[%8, %c0] : memref<8x16xi32, #tpu.memory_space<vmem>>, vector<8x1xi32>
    %c0_i32_3 = arith.constant 0 : i32
    %10 = vector.broadcast %c0_i32_3 : i32 to vector<8x1xi32>
    %11 = arith.cmpi eq, %9, %10 : vector<8x1xi32>
    %c-1_i32 = arith.constant -1 : i32
    %12 = vector.broadcast %c-1_i32 : i32 to vector<8x1xi32>
    %13 = arith.select %11, %12, %9 : vector<8x1xi1>, vector<8x1xi32>
    %14 = vector.broadcast %0 : i32 to vector<8x1xi32>
    %15 = arith.subi %13, %14 : vector<8x1xi32>
    %16 = vector.broadcast %15 : vector<8x1xi32> to vector<8x256xi32>
    %17 = vector.broadcast %4 : vector<1x256xi32> to vector<8x256xi32>
    %18 = arith.cmpi eq, %16, %17 : vector<8x256xi32>
    %19 = arith.extui %18 : vector<8x256xi1> to vector<8x256xi32>
    %20 = arith.addi %7, %19 : vector<8x256xi32>
    %21 = arith.index_cast %6 : i32 to index
    %c1 = arith.constant 1 : index
    %22 = vector.load %arg2[%21, %c1] : memref<8x16xi32, #tpu.memory_space<vmem>>, vector<8x1xi32>
    %c0_i32_4 = arith.constant 0 : i32
    %23 = vector.broadcast %c0_i32_4 : i32 to vector<8x1xi32>
    %24 = arith.cmpi eq, %22, %23 : vector<8x1xi32>
    %c-1_i32_5 = arith.constant -1 : i32
    %25 = vector.broadcast %c-1_i32_5 : i32 to vector<8x1xi32>
    %26 = arith.select %24, %25, %22 : vector<8x1xi1>, vector<8x1xi32>
    %27 = vector.broadcast %0 : i32 to vector<8x1xi32>
    %28 = arith.subi %26, %27 : vector<8x1xi32>
    %29 = vector.broadcast %28 : vector<8x1xi32> to vector<8x256xi32>
    %30 = vector.broadcast %4 : vector<1x256xi32> to vector<8x256xi32>
    %31 = arith.cmpi eq, %29, %30 : vector<8x256xi32>
    %32 = arith.extui %31 : vector<8x256xi1> to vector<8x256xi32>
    %33 = arith.addi %20, %32 : vector<8x256xi32>
    %34 = arith.index_cast %6 : i32 to index
    %c2 = arith.constant 2 : index
    %35 = vector.load %arg2[%34, %c2] : memref<8x16xi32, #tpu.memory_space<vmem>>, vector<8x1xi32>
    %c0_i32_6 = arith.constant 0 : i32
    %36 = vector.broadcast %c0_i32_6 : i32 to vector<8x1xi32>
    %37 = arith.cmpi eq, %35, %36 : vector<8x1xi32>
    %c-1_i32_7 = arith.constant -1 : i32
    %38 = vector.broadcast %c-1_i32_7 : i32 to vector<8x1xi32>
    %39 = arith.select %37, %38, %35 : vector<8x1xi1>, vector<8x1xi32>
    %40 = vector.broadcast %0 : i32 to vector<8x1xi32>
    %41 = arith.subi %39, %40 : vector<8x1xi32>
    %42 = vector.broadcast %41 : vector<8x1xi32> to vector<8x256xi32>
    %43 = vector.broadcast %4 : vector<1x256xi32> to vector<8x256xi32>
    %44 = arith.cmpi eq, %42, %43 : vector<8x256xi32>
    %45 = arith.extui %44 : vector<8x256xi1> to vector<8x256xi32>
    %46 = arith.addi %33, %45 : vector<8x256xi32>
    %47 = arith.index_cast %6 : i32 to index
    %c3 = arith.constant 3 : index
    %48 = vector.load %arg2[%47, %c3] : memref<8x16xi32, #tpu.memory_space<vmem>>, vector<8x1xi32>
    %c0_i32_8 = arith.constant 0 : i32
    %49 = vector.broadcast %c0_i32_8 : i32 to vector<8x1xi32>
    %50 = arith.cmpi eq, %48, %49 : vector<8x1xi32>
    %c-1_i32_9 = arith.constant -1 : i32
    %51 = vector.broadcast %c-1_i32_9 : i32 to vector<8x1xi32>
    %52 = arith.select %50, %51, %48 : vector<8x1xi1>, vector<8x1xi32>
    %53 = vector.broadcast %0 : i32 to vector<8x1xi32>
    %54 = arith.subi %52, %53 : vector<8x1xi32>
    %55 = vector.broadcast %54 : vector<8x1xi32> to vector<8x256xi32>
    %56 = vector.broadcast %4 : vector<1x256xi32> to vector<8x256xi32>
    %57 = arith.cmpi eq, %55, %56 : vector<8x256xi32>
    %58 = arith.extui %57 : vector<8x256xi1> to vector<8x256xi32>
    %59 = arith.addi %46, %58 : vector<8x256xi32>
    %60 = arith.index_cast %6 : i32 to index
    %c4 = arith.constant 4 : index
    %61 = vector.load %arg2[%60, %c4] : memref<8x16xi32, #tpu.memory_space<vmem>>, vector<8x1xi32>
    %c0_i32_10 = arith.constant 0 : i32
    %62 = vector.broadcast %c0_i32_10 : i32 to vector<8x1xi32>
    %63 = arith.cmpi eq, %61, %62 : vector<8x1xi32>
    %c-1_i32_11 = arith.constant -1 : i32
    %64 = vector.broadcast %c-1_i32_11 : i32 to vector<8x1xi32>
    %65 = arith.select %63, %64, %61 : vector<8x1xi1>, vector<8x1xi32>
    %66 = vector.broadcast %0 : i32 to vector<8x1xi32>
    %67 = arith.subi %65, %66 : vector<8x1xi32>
    %68 = vector.broadcast %67 : vector<8x1xi32> to vector<8x256xi32>
    %69 = vector.broadcast %4 : vector<1x256xi32> to vector<8x256xi32>
    %70 = arith.cmpi eq, %68, %69 : vector<8x256xi32>
    %71 = arith.extui %70 : vector<8x256xi1> to vector<8x256xi32>
    %72 = arith.addi %59, %71 : vector<8x256xi32>
    %73 = arith.index_cast %6 : i32 to index
    %c5 = arith.constant 5 : index
    %74 = vector.load %arg2[%73, %c5] : memref<8x16xi32, #tpu.memory_space<vmem>>, vector<8x1xi32>
    %c0_i32_12 = arith.constant 0 : i32
    %75 = vector.broadcast %c0_i32_12 : i32 to vector<8x1xi32>
    %76 = arith.cmpi eq, %74, %75 : vector<8x1xi32>
    %c-1_i32_13 = arith.constant -1 : i32
    %77 = vector.broadcast %c-1_i32_13 : i32 to vector<8x1xi32>
    %78 = arith.select %76, %77, %74 : vector<8x1xi1>, vector<8x1xi32>
    %79 = vector.broadcast %0 : i32 to vector<8x1xi32>
    %80 = arith.subi %78, %79 : vector<8x1xi32>
    %81 = vector.broadcast %80 : vector<8x1xi32> to vector<8x256xi32>
    %82 = vector.broadcast %4 : vector<1x256xi32> to vector<8x256xi32>
    %83 = arith.cmpi eq, %81, %82 : vector<8x256xi32>
    %84 = arith.extui %83 : vector<8x256xi1> to vector<8x256xi32>
    %85 = arith.addi %72, %84 : vector<8x256xi32>
    %86 = arith.index_cast %6 : i32 to index
    %c6 = arith.constant 6 : index
    %87 = vector.load %arg2[%86, %c6] : memref<8x16xi32, #tpu.memory_space<vmem>>, vector<8x1xi32>
    %c0_i32_14 = arith.constant 0 : i32
    %88 = vector.broadcast %c0_i32_14 : i32 to vector<8x1xi32>
    %89 = arith.cmpi eq, %87, %88 : vector<8x1xi32>
    %c-1_i32_15 = arith.constant -1 : i32
    %90 = vector.broadcast %c-1_i32_15 : i32 to vector<8x1xi32>
    %91 = arith.select %89, %90, %87 : vector<8x1xi1>, vector<8x1xi32>
    %92 = vector.broadcast %0 : i32 to vector<8x1xi32>
    %93 = arith.subi %91, %92 : vector<8x1xi32>
    %94 = vector.broadcast %93 : vector<8x1xi32> to vector<8x256xi32>
    %95 = vector.broadcast %4 : vector<1x256xi32> to vector<8x256xi32>
    %96 = arith.cmpi eq, %94, %95 : vector<8x256xi32>
    %97 = arith.extui %96 : vector<8x256xi1> to vector<8x256xi32>
    %98 = arith.addi %85, %97 : vector<8x256xi32>
    %99 = arith.index_cast %6 : i32 to index
    %c7 = arith.constant 7 : index
    %100 = vector.load %arg2[%99, %c7] : memref<8x16xi32, #tpu.memory_space<vmem>>, vector<8x1xi32>
    %c0_i32_16 = arith.constant 0 : i32
    %101 = vector.broadcast %c0_i32_16 : i32 to vector<8x1xi32>
    %102 = arith.cmpi eq, %100, %101 : vector<8x1xi32>
    %c-1_i32_17 = arith.constant -1 : i32
    %103 = vector.broadcast %c-1_i32_17 : i32 to vector<8x1xi32>
    %104 = arith.select %102, %103, %100 : vector<8x1xi1>, vector<8x1xi32>
    %105 = vector.broadcast %0 : i32 to vector<8x1xi32>
    %106 = arith.subi %104, %105 : vector<8x1xi32>
    %107 = vector.broadcast %106 : vector<8x1xi32> to vector<8x256xi32>
    %108 = vector.broadcast %4 : vector<1x256xi32> to vector<8x256xi32>
    %109 = arith.cmpi eq, %107, %108 : vector<8x256xi32>
    %110 = arith.extui %109 : vector<8x256xi1> to vector<8x256xi32>
    %111 = arith.addi %98, %110 : vector<8x256xi32>
    %112 = arith.index_cast %6 : i32 to index
    %c8 = arith.constant 8 : index
    %113 = vector.load %arg2[%112, %c8] : memref<8x16xi32, #tpu.memory_space<vmem>>, vector<8x1xi32>
    %c0_i32_18 = arith.constant 0 : i32
    %114 = vector.broadcast %c0_i32_18 : i32 to vector<8x1xi32>
    %115 = arith.cmpi eq, %113, %114 : vector<8x1xi32>
    %c-1_i32_19 = arith.constant -1 : i32
    %116 = vector.broadcast %c-1_i32_19 : i32 to vector<8x1xi32>
    %117 = arith.select %115, %116, %113 : vector<8x1xi1>, vector<8x1xi32>
    %118 = vector.broadcast %0 : i32 to vector<8x1xi32>
    %119 = arith.subi %117, %118 : vector<8x1xi32>
    %120 = vector.broadcast %119 : vector<8x1xi32> to vector<8x256xi32>
    %121 = vector.broadcast %4 : vector<1x256xi32> to vector<8x256xi32>
    %122 = arith.cmpi eq, %120, %121 : vector<8x256xi32>
    %123 = arith.extui %122 : vector<8x256xi1> to vector<8x256xi32>
    %124 = arith.addi %111, %123 : vector<8x256xi32>
    %125 = arith.index_cast %6 : i32 to index
    %c9 = arith.constant 9 : index
    %126 = vector.load %arg2[%125, %c9] : memref<8x16xi32, #tpu.memory_space<vmem>>, vector<8x1xi32>
    %c0_i32_20 = arith.constant 0 : i32
    %127 = vector.broadcast %c0_i32_20 : i32 to vector<8x1xi32>
    %128 = arith.cmpi eq, %126, %127 : vector<8x1xi32>
    %c-1_i32_21 = arith.constant -1 : i32
    %129 = vector.broadcast %c-1_i32_21 : i32 to vector<8x1xi32>
    %130 = arith.select %128, %129, %126 : vector<8x1xi1>, vector<8x1xi32>
    %131 = vector.broadcast %0 : i32 to vector<8x1xi32>
    %132 = arith.subi %130, %131 : vector<8x1xi32>
    %133 = vector.broadcast %132 : vector<8x1xi32> to vector<8x256xi32>
    %134 = vector.broadcast %4 : vector<1x256xi32> to vector<8x256xi32>
    %135 = arith.cmpi eq, %133, %134 : vector<8x256xi32>
    %136 = arith.extui %135 : vector<8x256xi1> to vector<8x256xi32>
    %137 = arith.addi %124, %136 : vector<8x256xi32>
    %138 = arith.index_cast %6 : i32 to index
    %c10 = arith.constant 10 : index
    %139 = vector.load %arg2[%138, %c10] : memref<8x16xi32, #tpu.memory_space<vmem>>, vector<8x1xi32>
    %c0_i32_22 = arith.constant 0 : i32
    %140 = vector.broadcast %c0_i32_22 : i32 to vector<8x1xi32>
    %141 = arith.cmpi eq, %139, %140 : vector<8x1xi32>
    %c-1_i32_23 = arith.constant -1 : i32
    %142 = vector.broadcast %c-1_i32_23 : i32 to vector<8x1xi32>
    %143 = arith.select %141, %142, %139 : vector<8x1xi1>, vector<8x1xi32>
    %144 = vector.broadcast %0 : i32 to vector<8x1xi32>
    %145 = arith.subi %143, %144 : vector<8x1xi32>
    %146 = vector.broadcast %145 : vector<8x1xi32> to vector<8x256xi32>
    %147 = vector.broadcast %4 : vector<1x256xi32> to vector<8x256xi32>
    %148 = arith.cmpi eq, %146, %147 : vector<8x256xi32>
    %149 = arith.extui %148 : vector<8x256xi1> to vector<8x256xi32>
    %150 = arith.addi %137, %149 : vector<8x256xi32>
    %151 = arith.index_cast %6 : i32 to index
    %c11 = arith.constant 11 : index
    %152 = vector.load %arg2[%151, %c11] : memref<8x16xi32, #tpu.memory_space<vmem>>, vector<8x1xi32>
    %c0_i32_24 = arith.constant 0 : i32
    %153 = vector.broadcast %c0_i32_24 : i32 to vector<8x1xi32>
    %154 = arith.cmpi eq, %152, %153 : vector<8x1xi32>
    %c-1_i32_25 = arith.constant -1 : i32
    %155 = vector.broadcast %c-1_i32_25 : i32 to vector<8x1xi32>
    %156 = arith.select %154, %155, %152 : vector<8x1xi1>, vector<8x1xi32>
    %157 = vector.broadcast %0 : i32 to vector<8x1xi32>
    %158 = arith.subi %156, %157 : vector<8x1xi32>
    %159 = vector.broadcast %158 : vector<8x1xi32> to vector<8x256xi32>
    %160 = vector.broadcast %4 : vector<1x256xi32> to vector<8x256xi32>
    %161 = arith.cmpi eq, %159, %160 : vector<8x256xi32>
    %162 = arith.extui %161 : vector<8x256xi1> to vector<8x256xi32>
    %163 = arith.addi %150, %162 : vector<8x256xi32>
    %164 = arith.index_cast %6 : i32 to index
    %c12 = arith.constant 12 : index
    %165 = vector.load %arg2[%164, %c12] : memref<8x16xi32, #tpu.memory_space<vmem>>, vector<8x1xi32>
    %c0_i32_26 = arith.constant 0 : i32
    %166 = vector.broadcast %c0_i32_26 : i32 to vector<8x1xi32>
    %167 = arith.cmpi eq, %165, %166 : vector<8x1xi32>
    %c-1_i32_27 = arith.constant -1 : i32
    %168 = vector.broadcast %c-1_i32_27 : i32 to vector<8x1xi32>
    %169 = arith.select %167, %168, %165 : vector<8x1xi1>, vector<8x1xi32>
    %170 = vector.broadcast %0 : i32 to vector<8x1xi32>
    %171 = arith.subi %169, %170 : vector<8x1xi32>
    %172 = vector.broadcast %171 : vector<8x1xi32> to vector<8x256xi32>
    %173 = vector.broadcast %4 : vector<1x256xi32> to vector<8x256xi32>
    %174 = arith.cmpi eq, %172, %173 : vector<8x256xi32>
    %175 = arith.extui %174 : vector<8x256xi1> to vector<8x256xi32>
    %176 = arith.addi %163, %175 : vector<8x256xi32>
    %177 = arith.index_cast %6 : i32 to index
    %c13 = arith.constant 13 : index
    %178 = vector.load %arg2[%177, %c13] : memref<8x16xi32, #tpu.memory_space<vmem>>, vector<8x1xi32>
    %c0_i32_28 = arith.constant 0 : i32
    %179 = vector.broadcast %c0_i32_28 : i32 to vector<8x1xi32>
    %180 = arith.cmpi eq, %178, %179 : vector<8x1xi32>
    %c-1_i32_29 = arith.constant -1 : i32
    %181 = vector.broadcast %c-1_i32_29 : i32 to vector<8x1xi32>
    %182 = arith.select %180, %181, %178 : vector<8x1xi1>, vector<8x1xi32>
    %183 = vector.broadcast %0 : i32 to vector<8x1xi32>
    %184 = arith.subi %182, %183 : vector<8x1xi32>
    %185 = vector.broadcast %184 : vector<8x1xi32> to vector<8x256xi32>
    %186 = vector.broadcast %4 : vector<1x256xi32> to vector<8x256xi32>
    %187 = arith.cmpi eq, %185, %186 : vector<8x256xi32>
    %188 = arith.extui %187 : vector<8x256xi1> to vector<8x256xi32>
    %189 = arith.addi %176, %188 : vector<8x256xi32>
    %190 = arith.index_cast %6 : i32 to index
    %c14 = arith.constant 14 : index
    %191 = vector.load %arg2[%190, %c14] : memref<8x16xi32, #tpu.memory_space<vmem>>, vector<8x1xi32>
    %c0_i32_30 = arith.constant 0 : i32
    %192 = vector.broadcast %c0_i32_30 : i32 to vector<8x1xi32>
    %193 = arith.cmpi eq, %191, %192 : vector<8x1xi32>
    %c-1_i32_31 = arith.constant -1 : i32
    %194 = vector.broadcast %c-1_i32_31 : i32 to vector<8x1xi32>
    %195 = arith.select %193, %194, %191 : vector<8x1xi1>, vector<8x1xi32>
    %196 = vector.broadcast %0 : i32 to vector<8x1xi32>
    %197 = arith.subi %195, %196 : vector<8x1xi32>
    %198 = vector.broadcast %197 : vector<8x1xi32> to vector<8x256xi32>
    %199 = vector.broadcast %4 : vector<1x256xi32> to vector<8x256xi32>
    %200 = arith.cmpi eq, %198, %199 : vector<8x256xi32>
    %201 = arith.extui %200 : vector<8x256xi1> to vector<8x256xi32>
    %202 = arith.addi %189, %201 : vector<8x256xi32>
    %203 = arith.index_cast %6 : i32 to index
    %c15 = arith.constant 15 : index
    %204 = vector.load %arg2[%203, %c15] : memref<8x16xi32, #tpu.memory_space<vmem>>, vector<8x1xi32>
    %c0_i32_32 = arith.constant 0 : i32
    %205 = vector.broadcast %c0_i32_32 : i32 to vector<8x1xi32>
    %206 = arith.cmpi eq, %204, %205 : vector<8x1xi32>
    %c-1_i32_33 = arith.constant -1 : i32
    %207 = vector.broadcast %c-1_i32_33 : i32 to vector<8x1xi32>
    %208 = arith.select %206, %207, %204 : vector<8x1xi1>, vector<8x1xi32>
    %209 = vector.broadcast %0 : i32 to vector<8x1xi32>
    %210 = arith.subi %208, %209 : vector<8x1xi32>
    %211 = vector.broadcast %210 : vector<8x1xi32> to vector<8x256xi32>
    %212 = vector.broadcast %4 : vector<1x256xi32> to vector<8x256xi32>
    %213 = arith.cmpi eq, %211, %212 : vector<8x256xi32>
    %214 = arith.extui %213 : vector<8x256xi1> to vector<8x256xi32>
    %215 = arith.addi %202, %214 : vector<8x256xi32>
    %216 = arith.index_cast %6 : i32 to index
    %c0_34 = arith.constant 0 : index
    %217 = vector.load %arg6[%216, %c0_34] : memref<8x128xf32, #tpu.memory_space<vmem>>, vector<8x128xf32>
    %218 = arith.sitofp %215 : vector<8x256xi32> to vector<8x256xbf16>
    %c0_35 = arith.constant 0 : index
    %c0_36 = arith.constant 0 : index
    %219 = vector.load %arg3[%c0_35, %c0_36] : memref<256x128xbf16, #tpu.memory_space<vmem>>, vector<256x128xbf16>
    %cst = arith.constant dense<0.000000e+00> : vector<8x128xf32>
    %220 = tpu.matmul %218, %219, %cst {dimension_numbers = #tpu.dot_dimension_numbers<[1], [0], [0], [1], [0, 0, 1, 1], [], []>} : vector<8x256xbf16>, vector<256x128xbf16>, vector<8x128xf32> -> vector<8x128xf32>
    %221 = arith.addf %217, %220 : vector<8x128xf32>
    %222 = arith.index_cast %6 : i32 to index
    %c0_37 = arith.constant 0 : index
    %223 = vector.load %arg6[%222, %c0_37] : memref<8x128xf32, #tpu.memory_space<vmem>>, vector<8x128xf32>
    tpu.vector_store %arg6[%222, %c0_37], %221 {strides = array<i32>} : memref<8x128xf32, #tpu.memory_space<vmem>>, vector<8x128xf32>,
    %c1_i32 = arith.constant 1 : i32
    %c7_i32 = arith.constant 7 : i32
    %224 = arith.cmpi eq, %arg1, %c7_i32 : i32
    %225 = arith.extui %224 : i1 to i32
    %c0_i32_38 = arith.constant 0 : i32
    %226 = arith.cmpi ne, %225, %c0_i32_38 : i32
    scf.if %226 {
      %c0_39 = arith.constant 0 : index
      %c0_40 = arith.constant 0 : index
      %227 = vector.load %arg2[%c0_39, %c0_40] : memref<8x16xi32, #tpu.memory_space<vmem>>, vector<8x16xi32>
      %c0_i32_41 = arith.constant 0 : i32
      %228 = vector.broadcast %c0_i32_41 : i32 to vector<8x16xi32>
      %229 = arith.cmpi ne, %227, %228 : vector<8x16xi32>
      %230 = arith.extui %229 : vector<8x16xi1> to vector<8x16xi32>
      %231 = arith.sitofp %230 : vector<8x16xi32> to vector<8x16xf32>
      %cst_42 = arith.constant dense<0.000000e+00> : vector<8xf32>
      %232 = vector.multi_reduction <add>, %231, %cst_42 [1] : vector<8x16xf32> to vector<8xf32>
      %233 = vector.shape_cast %232 : vector<8xf32> to vector<8x1xf32>
      %cst_43 = arith.constant 1.000000e+00 : f32
      %234 = vector.broadcast %cst_43 : f32 to vector<8x1xf32>
      %235 = arith.maximumf %233, %234 : vector<8x1xf32>
      %236 = tpu.reciprocal %235 {approx = true} : vector<8x1xf32> -> vector<8x1xf32>
      %c0_44 = arith.constant 0 : index
      %c0_45 = arith.constant 0 : index
      %237 = vector.load %arg6[%c0_44, %c0_45] : memref<8x128xf32, #tpu.memory_space<vmem>>, vector<8x128xf32>
      %238 = vector.broadcast %236 : vector<8x1xf32> to vector<8x128xf32>
      %239 = arith.mulf %237, %238 : vector<8x128xf32>
      %240 = arith.truncf %239 : vector<8x128xf32> to vector<8x128xbf16>
      %c0_46 = arith.constant 0 : index
      %c0_47 = arith.constant 0 : index
      %241 = vector.load %arg4[%c0_46, %c0_47] : memref<128x128xbf16, #tpu.memory_space<vmem>>, vector<128x128xbf16>
      %cst_48 = arith.constant dense<0.000000e+00> : vector<8x128xf32>
      %242 = tpu.matmul %240, %241, %cst_48 {dimension_numbers = #tpu.dot_dimension_numbers<[1], [0], [0], [1], [0, 0, 1, 1], [], []>} : vector<8x128xbf16>, vector<128x128xbf16>, vector<8x128xf32> -> vector<8x128xf32>
      %c0_49 = arith.constant 0 : index
      %c0_50 = arith.constant 0 : index
      %243 = vector.load %arg5[%c0_49, %c0_50] : memref<1x128xf32, #tpu.memory_space<vmem>>, vector<1x128xf32>
      %244 = vector.broadcast %243 : vector<1x128xf32> to vector<8x128xf32>
      %245 = arith.addf %242, %244 : vector<8x128xf32>
      %c0_51 = arith.constant 0 : index
      %c0_52 = arith.constant 0 : index
      %246 = vector.load %arg6[%c0_51, %c0_52] : memref<8x128xf32, #tpu.memory_space<vmem>>, vector<8x128xf32>
      tpu.vector_store %arg6[%c0_51, %c0_52], %245 {strides = array<i32>} : memref<8x128xf32, #tpu.memory_space<vmem>>, vector<8x128xf32>,
    } else {
    }
    return
  }
  func.func @transform_0(%arg0: i32, %arg1: i32) -> (i32, i32) {
    %c0_i32 = arith.constant 0 : i32
    %c0_i32_0 = arith.constant 0 : i32
    return %arg0, %c0_i32 : i32, i32
  }
  func.func @transform_1(%arg0: i32, %arg1: i32) -> (i32, i32) {
    %c0_i32 = arith.constant 0 : i32
    %c0_i32_0 = arith.constant 0 : i32
    return %arg1, %c0_i32 : i32, i32
  }
  func.func @transform_2(%arg0: i32, %arg1: i32) -> (i32, i32) {
    %c0_i32 = arith.constant 0 : i32
    %c0_i32_0 = arith.constant 0 : i32
    %c0_i32_1 = arith.constant 0 : i32
    return %c0_i32, %c0_i32_0 : i32, i32
  }
  func.func @transform_3(%arg0: i32, %arg1: i32) -> (i32, i32) {
    %c0_i32 = arith.constant 0 : i32
    %c0_i32_0 = arith.constant 0 : i32
    %c0_i32_1 = arith.constant 0 : i32
    return %c0_i32, %c0_i32_0 : i32, i32
  }
  func.func @transform_4(%arg0: i32, %arg1: i32) -> (i32, i32) {
    %c0_i32 = arith.constant 0 : i32
    %c0_i32_0 = arith.constant 0 : i32
    return %arg0, %c0_i32 : i32, i32
  }
}

</mosaic_0001>

<llo_original>
// kernel: tpu_custom_call.1
$region0: #{tpu_custom_call.1}
  #allocation0 [shape = 'u32[]', space=smem, size = 0x4, offset = 0x4, fixed_abs, tag = 'smem constant byte address 0x4 - core index']
  #allocation1 [shape = 'u32[144,128]{1,0:T(1,128)}', space=vmem, size = 0x12000, scoped, tag = 'internal scratch']
  %s0 = inlined_call_operand.hbm [shape: s32[8,16], index: 0, kind: input, shape index: {}]
  %s1 = inlined_call_operand.hbm [shape: bf16[2048,128], index: 1, kind: input, shape index: {}]
  %s2 = inlined_call_operand.hbm [shape: bf16[128,128], index: 2, kind: input, shape index: {}]
  %s3 = inlined_call_operand.vmem [shape: f32[1,128], index: 3, kind: input, shape index: {}]
  %s4 = inlined_call_operand.hbm [shape: f32[8,128], index: 4, kind: output, shape index: {}]
  %s5 = sld [smem:[#allocation0]]
  $region69: #{tpu_custom_call.1} parent=0
    _
  %s7 = ssub.s32 1, %s5
  %s8 = scalar_select 0, %s7, %s5
  $region1: #{tpu_custom_call.1} parent=0
    #allocation2 [shape = 'u8[4096]{0}', space=vmem, size = 0x1000, scoped, tag = 'input window, operand 0, single buffered']
    #allocation3 [shape = 's32[2]{0}', space=sflag, size = 0x8, scoped, tag = 'scoped memory for tpu_custom_call.1']
    #allocation4 [shape = 's32[2]{0}', space=sflag, size = 0x8, scoped, tag = 'scoped memory for tpu_custom_call.1']
    #allocation5 [shape = 'u8[131072]{0}', space=vmem, size = 0x20000, scoped, tag = 'input window, operand 1']
    #allocation6 [shape = 's32[2]{0}', space=sflag, size = 0x8, scoped, tag = 'scoped memory for tpu_custom_call.1']
    #allocation7 [shape = 'u8[32768]{0}', space=vmem, size = 0x8000, scoped, tag = 'input window, operand 2, single buffered']
    #allocation8 [shape = 'u8[4096]{0}', space=vmem, size = 0x1000, scoped, tag = 'output window, operand 0, single buffered']
    %9 = vsyncpa [#allocation3], 0
    %10 = vsyncpa [#allocation6], 0
    %s11 = scalar_lea.sflag [#allocation6], 1
    %12 = vsyncpa %s11, 0
    %13 = vsyncpa [#allocation4], 0
    loop: start=0, step=1, limit=10
    $region2: #{tpu_custom_call.1} parent=1 // loop_pre_header
      _
    $region3: #{tpu_custom_call.1} parent=1 // loop_header
      %s15 = sphi 0, %s19
      %p16 = scmp.ge.s32.totalorder %s15, 10
      %s22 = sphi 0, %s34
      %s23 = sphi 0, %s30
      %s24 = sphi 0, %s22
      %s25 = sphi 0, %s23
      %s26 = sphi 0, %s24
      %s27 = sphi 0, %s25
      %s37 = sphi 0, %s39
      %s40 = sphi 0, %s37
      %s41 = sphi 0, %s40
      %s57 = sphi 0, %s41
      %s63 = sphi 0, %s65
      %s66 = sphi 0, %s63
      %s67 = sphi 0, %s66
      %s83 = sphi 0, %s67
      %s87 = sphi 0, %s87
      %s89 = sphi 0, %s87
      %s90 = sphi 0, %s89
      %s104 = sphi 0, %s90
      %s108 = sphi 0, %s108
      %s110 = sphi 0, %s108
      %s111 = sphi 0, %s110
      %s125 = sphi 0, %s111
      %s131 = sphi 0, %s133
      %s134 = sphi 0, %s131
      %s135 = sphi 0, %s134
      %s151 = sphi 0, %s135
    $region4: #{tpu_custom_call.1} parent=1 // loop_header_branch
      %18 = sbr.rel (%p16) target = $region8
    $region5: #{tpu_custom_call.1} parent=1 // loop_body
      %s20 = ssub.s32 %s15, 1
      %s21 = ssub.s32 %s15, 2
      %s28 = sadd.s32 1, %s23
      %p29 = scmp.ge.s32.totalorder %s28, 8
      %s30 = scalar_select %p29, 0, %s28
      %s31 = sadd.s32 1, %s22
      %s32 = scalar_select %p29, %s31, %s22
      %p33 = scmp.ge.s32.totalorder %s32, 1
      %s34 = scalar_select %p33, 0, %s32
      %s35 = ssub.s32 %s22, %s34
      %p36 = scmp.eq.s32.totalorder %s35, 0
      %s38 = sadd.s32 %s37, 1
      %s39 = scalar_select %p36, %s37, %s38
      %p42 = pneg %p36
      %p43 = scmp.eq.s32.totalorder %s15, 7
      %p44 = por %p42, %p43
      %p45 = scmp.ne.s32.totalorder %s37, %s40
      %p46 = scmp.eq.s32.totalorder %s15, 0
      %p47 = por %p45, %p46
      %p48 = scmp.ne.s32.totalorder %s37, %s40
      %p49 = scmp.eq.s32.totalorder %s20, 7
      %p50 = por %p48, %p49
      %p51 = scmp.ne.s32.totalorder %s40, %s41
      %p52 = scmp.eq.s32.totalorder %s20, 0
      %p53 = por %p51, %p52
      %p54 = scmp.ne.s32.totalorder %s40, %s41
      %p55 = scmp.eq.s32.totalorder %s21, 7
      %p56 = por %p54, %p55
      %p58 = scmp.ne.s32.totalorder %s41, %s57
      %p59 = scmp.eq.s32.totalorder %s21, 0
      %p60 = por %p58, %p59
      %s61 = ssub.s32 %s23, %s30
      %p62 = scmp.eq.s32.totalorder %s61, 0
      %s64 = sadd.s32 %s63, 1
      %s65 = scalar_select %p62, %s63, %s64
      %p68 = pneg %p62
      %p69 = scmp.eq.s32.totalorder %s15, 7
      %p70 = por %p68, %p69
      %p71 = scmp.ne.s32.totalorder %s63, %s66
      %p72 = scmp.eq.s32.totalorder %s15, 0
      %p73 = por %p71, %p72
      %p74 = scmp.ne.s32.totalorder %s63, %s66
      %p75 = scmp.eq.s32.totalorder %s20, 7
      %p76 = por %p74, %p75
      %p77 = scmp.ne.s32.totalorder %s66, %s67
      %p78 = scmp.eq.s32.totalorder %s20, 0
      %p79 = por %p77, %p78
      %p80 = scmp.ne.s32.totalorder %s66, %s67
      %p81 = scmp.eq.s32.totalorder %s21, 7
      %p82 = por %p80, %p81
      %p84 = scmp.ne.s32.totalorder %s67, %s83
      %p85 = scmp.eq.s32.totalorder %s21, 0
      %p86 = por %p84, %p85
      %s88 = sadd.s32 %s87, 1
      %p91 = scmp.eq.s32.totalorder %s15, 7
      %p92 = scmp.ne.s32.totalorder %s87, %s89
      %p93 = scmp.eq.s32.totalorder %s15, 0
      %p94 = por %p92, %p93
      %p95 = scmp.ne.s32.totalorder %s87, %s89
      %p96 = scmp.eq.s32.totalorder %s20, 7
      %p97 = por %p95, %p96
      %p98 = scmp.ne.s32.totalorder %s89, %s90
      %p99 = scmp.eq.s32.totalorder %s20, 0
      %p100 = por %p98, %p99
      %p101 = scmp.ne.s32.totalorder %s89, %s90
      %p102 = scmp.eq.s32.totalorder %s21, 7
      %p103 = por %p101, %p102
      %p105 = scmp.ne.s32.totalorder %s90, %s104
      %p106 = scmp.eq.s32.totalorder %s21, 0
      %p107 = por %p105, %p106
      %s109 = sadd.s32 %s108, 1
      %p112 = scmp.eq.s32.totalorder %s15, 7
      %p113 = scmp.ne.s32.totalorder %s108, %s110
      %p114 = scmp.eq.s32.totalorder %s15, 0
      %p115 = por %p113, %p114
      %p116 = scmp.ne.s32.totalorder %s108, %s110
      %p117 = scmp.eq.s32.totalorder %s20, 7
      %p118 = por %p116, %p117
      %p119 = scmp.ne.s32.totalorder %s110, %s111
      %p120 = scmp.eq.s32.totalorder %s20, 0
      %p121 = por %p119, %p120
      %p122 = scmp.ne.s32.totalorder %s110, %s111
      %p123 = scmp.eq.s32.totalorder %s21, 7
      %p124 = por %p122, %p123
      %p126 = scmp.ne.s32.totalorder %s111, %s125
      %p127 = scmp.eq.s32.totalorder %s21, 0
      %p128 = por %p126, %p127
      %s129 = ssub.s32 %s22, %s34
      %p130 = scmp.eq.s32.totalorder %s129, 0
      %s132 = sadd.s32 %s131, 1
      %s133 = scalar_select %p130, %s131, %s132
      %p136 = pneg %p130
      %p137 = scmp.eq.s32.totalorder %s15, 7
      %p138 = por %p136, %p137
      %p139 = scmp.ne.s32.totalorder %s131, %s134
      %p140 = scmp.eq.s32.totalorder %s15, 0
      %p141 = por %p139, %p140
      %p142 = scmp.ne.s32.totalorder %s131, %s134
      %p143 = scmp.eq.s32.totalorder %s20, 7
      %p144 = por %p142, %p143
      %p145 = scmp.ne.s32.totalorder %s134, %s135
      %p146 = scmp.eq.s32.totalorder %s20, 0
      %p147 = por %p145, %p146
      %p148 = scmp.ne.s32.totalorder %s134, %s135
      %p149 = scmp.eq.s32.totalorder %s21, 7
      %p150 = por %p148, %p149
      %p152 = scmp.ne.s32.totalorder %s135, %s151
      %p153 = scmp.eq.s32.totalorder %s21, 0
      %p154 = por %p152, %p153
      %p155 = scmp.le.s32.totalorder 1, %s15
      %p156 = scmp.lt.s32.totalorder %s15, 9
      %p157 = pnand %p155, %p156
      %p158 = pneg %p157
      // Predicated region
      $region9: #{tpu_custom_call.1} parent=5 // pred_check
        _
      $region10: #{tpu_custom_call.1} parent=5 // pred_check_branch
        %160 = sbr.rel (%p157) target = $region12
      $region11: #{tpu_custom_call.1} parent=5 // pred_region
        %s161 = ssub.s32 %s15, 1
        // Predicated region
        $region13: #{tpu_custom_call.1} parent=11 // pred_check
          %p162 = pneg %p53
        $region14: #{tpu_custom_call.1} parent=11 // pred_check_branch
          %164 = sbr.rel (%p162) target = $region16
        $region15: #{tpu_custom_call.1} parent=11 // pred_region
          %s166 = ssub.s32 128, 128
          %167 = vsyncadd [#allocation3], %s166
          %s168 = smul.addr %s24, 128
          %s169 = scalar_lea.hbm %s0, %s168
          %s171 = sshll.u32 [#allocation2], 4
          %s172 = int_to_ptr.vmem [resolvable:$true] %s171
          %174 = dma.hbm_to_vmem [thread:$0]  %s169, 128, %s172, [#allocation3]
        $region16: #{tpu_custom_call.1} parent=11 // pred_fallthru
          _
        // Predicated region
        $region17: #{tpu_custom_call.1} parent=11 // pred_check
          %p175 = pneg %p100
        $region18: #{tpu_custom_call.1} parent=11 // pred_check_branch
          %177 = sbr.rel (%p175) target = $region20
        $region19: #{tpu_custom_call.1} parent=11 // pred_region
          %s179 = ssub.s32 1024, 1024
          %180 = vsyncadd [#allocation6], %s179
          %s181 = sshll.u32 [#allocation7], 4
          %s182 = int_to_ptr.vmem [resolvable:$true] %s181
          %187 = dma.hbm_to_vmem [thread:$0]  %s2, 1024, %s182, [#allocation6], 64, 64, 4
        $region20: #{tpu_custom_call.1} parent=11 // pred_fallthru
          _
        // Predicated region
        $region21: #{tpu_custom_call.1} parent=11 // pred_check
          %p188 = pneg %p121
        $region22: #{tpu_custom_call.1} parent=11 // pred_check_branch
          %190 = sbr.rel (%p188) target = $region24
        $region23: #{tpu_custom_call.1} parent=11 // pred_region
          _
        $region24: #{tpu_custom_call.1} parent=11 // pred_fallthru
          _
      $region12: #{tpu_custom_call.1} parent=5 // pred_fallthru
        _
      %p191 = scmp.lt.s32.totalorder %s15, 8
      // Predicated region
      $region25: #{tpu_custom_call.1} parent=5 // pred_check
        %p192 = pneg %p191
      $region26: #{tpu_custom_call.1} parent=5 // pred_check_branch
        %194 = sbr.rel (%p192) target = $region28
      $region27: #{tpu_custom_call.1} parent=5 // pred_region
        // Predicated region
        $region29: #{tpu_custom_call.1} parent=27 // pred_check
          %p195 = pneg %p73
        $region30: #{tpu_custom_call.1} parent=27 // pred_check_branch
          %197 = sbr.rel (%p195) target = $region32
        $region31: #{tpu_custom_call.1} parent=27 // pred_region
          %s198 = sand.u32 %s15, 1
          %s199 = scalar_lea.sflag [#allocation6], %s198
          %s200 = sand.u32 %s63, 1
          %s201 = smul.addr %s200, 128
          %s202 = scalar_lea.vmem [#allocation5], %s201
          %s203 = smul.u32 32, %s23
          %s205 = ssub.s32 2048, 2048
          %206 = vsyncadd %s199, %s205
          %s207 = smul.addr %s203, 64
          %s208 = scalar_lea.hbm %s1, %s207
          %s209 = sshll.u32 %s202, 4
          %s210 = int_to_ptr.vmem [resolvable:$true] %s209
          %215 = dma.hbm_to_vmem [thread:$0]  %s208, 2048, %s210, %s199, 64, 64, 4
        $region32: #{tpu_custom_call.1} parent=27 // pred_fallthru
          _
      $region28: #{tpu_custom_call.1} parent=5 // pred_fallthru
        _
      %p216 = scmp.le.s32.totalorder 1, %s15
      %p217 = scmp.lt.s32.totalorder %s15, 9
      %p218 = pnand %p216, %p217
      %p219 = pneg %p218
      // Predicated region
      $region33: #{tpu_custom_call.1} parent=5 // pred_check
        _
      $region34: #{tpu_custom_call.1} parent=5 // pred_check_branch
        %221 = sbr.rel (%p218) target = $region36
      $region35: #{tpu_custom_call.1} parent=5 // pred_region
        %s222 = ssub.s32 %s15, 1
        // Predicated region
        $region37: #{tpu_custom_call.1} parent=35 // pred_check
          %p223 = pneg %p53
        $region38: #{tpu_custom_call.1} parent=35 // pred_check_branch
          %225 = sbr.rel (%p223) target = $region40
        $region39: #{tpu_custom_call.1} parent=35 // pred_region
          %226 = dma.done [#allocation3], 128
        $region40: #{tpu_custom_call.1} parent=35 // pred_fallthru
          _
        %s227 = sand.u32 %s20, 1
        %s228 = scalar_lea.sflag [#allocation6], %s227
        %s229 = sand.u32 %s66, 1
        %s230 = smul.addr %s229, 128
        %s231 = scalar_lea.vmem [#allocation5], %s230
        // Predicated region
        $region41: #{tpu_custom_call.1} parent=35 // pred_check
          %p232 = pneg %p79
        $region42: #{tpu_custom_call.1} parent=35 // pred_check_branch
          %234 = sbr.rel (%p232) target = $region44
        $region43: #{tpu_custom_call.1} parent=35 // pred_region
          %235 = dma.done %s228, 2048
        $region44: #{tpu_custom_call.1} parent=35 // pred_fallthru
          _
        // Predicated region
        $region45: #{tpu_custom_call.1} parent=35 // pred_check
          %p236 = pneg %p100
        $region46: #{tpu_custom_call.1} parent=35 // pred_check_branch
          %238 = sbr.rel (%p236) target = $region48
        $region47: #{tpu_custom_call.1} parent=35 // pred_region
          %239 = dma.done [#allocation6], 1024
        $region48: #{tpu_custom_call.1} parent=35 // pred_fallthru
          _
        %p240 = pneg %p53
        %p241 = pneg %p50
        %s242 = sand.u32 %s20, 1
        %s243 = scalar_lea.sflag [#allocation6], %s242
        %s244 = sand.u32 %s66, 1
        %s245 = smul.addr %s244, 128
        %s246 = scalar_lea.vmem [#allocation5], %s245
        %p247 = pneg %p79
        %p248 = pneg %p76
        %p249 = pneg %p100
        %p250 = pneg %p97
        %p251 = pneg %p121
        %p252 = pneg %p118
        %p253 = pneg %p147
        %p254 = pneg %p144
        %s255 = smul.u32 32, %s25
        %s257 = smul.u32 %s25, 256
        %p258 = scmp.eq.s32.totalorder %s25, 0
        // Predicated region
        $region49: #{tpu_custom_call.1} parent=35 // pred_check
          %p259 = pneg %p258
        $region50: #{tpu_custom_call.1} parent=35 // pred_check_branch
          %261 = sbr.rel (%p259) target = $region52
        $region51: #{tpu_custom_call.1} parent=35 // pred_region
          %262 = vst [vmem:[#allocation8] sm:$0xff] 0.0
        $region52: #{tpu_custom_call.1} parent=35 // pred_fallthru
          _
        %v263 = vlaneseq
        %v264 = vand.u32 %v263, 127
        %v265 = vadd.s32 %v264, 128
        %v266 = vld [vmem:[#allocation2] sm:$0xff]
        %vm267 = vcmp.eq.s32.totalorder %v266, 0
        %v268 = vsel %vm267, 4294967295, %v266
        %v269 = vstv %s257
        %v270 = vsub.s32 %v268, %v269
        %271 = vset.pattern.permute.xlu0 0
        %272 = vperm.xlu0 %271, %v270
        %v273 = vpop.permute.xlu0 %272
        %vm274 = vcmp.eq.s32.totalorder %v273, %v264
        %vm275 = vcmp.eq.s32.totalorder %v273, %v265
        %v276 = vsel %vm274, 1, 0
        %v277 = vsel %vm275, 1, 0
        %278 = vset.pattern.permute.xlu0 1
        %279 = vperm.xlu0 %278, %v270
        %v280 = vpop.permute.xlu0 %279
        %vm281 = vcmp.eq.s32.totalorder %v280, %v264
        %vm282 = vcmp.eq.s32.totalorder %v280, %v265
        %v283 = vsel %vm281, 1, 0
        %v284 = vsel %vm282, 1, 0
        %v285 = vadd.s32 %v276, %v283
        %v286 = vadd.s32 %v277, %v284
        %287 = vset.pattern.permute.xlu0 2
        %288 = vperm.xlu0 %287, %v270
        %v289 = vpop.permute.xlu0 %288
        %vm290 = vcmp.eq.s32.totalorder %v289, %v264
        %vm291 = vcmp.eq.s32.totalorder %v289, %v265
        %v292 = vsel %vm290, 1, 0
        %v293 = vsel %vm291, 1, 0
        %v294 = vadd.s32 %v285, %v292
        %v295 = vadd.s32 %v286, %v293
        %296 = vset.pattern.permute.xlu0 3
        %297 = vperm.xlu0 %296, %v270
        %v298 = vpop.permute.xlu0 %297
        %vm299 = vcmp.eq.s32.totalorder %v298, %v264
        %vm300 = vcmp.eq.s32.totalorder %v298, %v265
        %v301 = vsel %vm299, 1, 0
        %v302 = vsel %vm300, 1, 0
        %v303 = vadd.s32 %v294, %v301
        %v304 = vadd.s32 %v295, %v302
        %305 = vset.pattern.permute.xlu0 4
        %306 = vperm.xlu0 %305, %v270
        %v307 = vpop.permute.xlu0 %306
        %vm308 = vcmp.eq.s32.totalorder %v307, %v264
        %vm309 = vcmp.eq.s32.totalorder %v307, %v265
        %v310 = vsel %vm308, 1, 0
        %v311 = vsel %vm309, 1, 0
        %v312 = vadd.s32 %v303, %v310
        %v313 = vadd.s32 %v304, %v311
        %314 = vset.pattern.permute.xlu0 5
        %315 = vperm.xlu0 %314, %v270
        %v316 = vpop.permute.xlu0 %315
        %vm317 = vcmp.eq.s32.totalorder %v316, %v264
        %vm318 = vcmp.eq.s32.totalorder %v316, %v265
        %v319 = vsel %vm317, 1, 0
        %v320 = vsel %vm318, 1, 0
        %v321 = vadd.s32 %v312, %v319
        %v322 = vadd.s32 %v313, %v320
        %323 = vset.pattern.permute.xlu0 6
        %324 = vperm.xlu0 %323, %v270
        %v325 = vpop.permute.xlu0 %324
        %vm326 = vcmp.eq.s32.totalorder %v325, %v264
        %vm327 = vcmp.eq.s32.totalorder %v325, %v265
        %v328 = vsel %vm326, 1, 0
        %v329 = vsel %vm327, 1, 0
        %v330 = vadd.s32 %v321, %v328
        %v331 = vadd.s32 %v322, %v329
        %332 = vset.pattern.permute.xlu0 7
        %333 = vperm.xlu0 %332, %v270
        %v334 = vpop.permute.xlu0 %333
        %vm335 = vcmp.eq.s32.totalorder %v334, %v264
        %vm336 = vcmp.eq.s32.totalorder %v334, %v265
        %v337 = vsel %vm335, 1, 0
        %v338 = vsel %vm336, 1, 0
        %v339 = vadd.s32 %v330, %v337
        %v340 = vadd.s32 %v331, %v338
        %341 = vset.pattern.permute.xlu0 8
        %342 = vperm.xlu0 %341, %v270
        %v343 = vpop.permute.xlu0 %342
        %vm344 = vcmp.eq.s32.totalorder %v343, %v264
        %vm345 = vcmp.eq.s32.totalorder %v343, %v265
        %v346 = vsel %vm344, 1, 0
        %v347 = vsel %vm345, 1, 0
        %v348 = vadd.s32 %v339, %v346
        %v349 = vadd.s32 %v340, %v347
        %350 = vset.pattern.permute.xlu0 9
        %351 = vperm.xlu0 %350, %v270
        %v352 = vpop.permute.xlu0 %351
        %vm353 = vcmp.eq.s32.totalorder %v352, %v264
        %vm354 = vcmp.eq.s32.totalorder %v352, %v265
        %v355 = vsel %vm353, 1, 0
        %v356 = vsel %vm354, 1, 0
        %v357 = vadd.s32 %v348, %v355
        %v358 = vadd.s32 %v349, %v356
        %359 = vset.pattern.permute.xlu0 10
        %360 = vperm.xlu0 %359, %v270
        %v361 = vpop.permute.xlu0 %360
        %vm362 = vcmp.eq.s32.totalorder %v361, %v264
        %vm363 = vcmp.eq.s32.totalorder %v361, %v265
        %v364 = vsel %vm362, 1, 0
        %v365 = vsel %vm363, 1, 0
        %v366 = vadd.s32 %v357, %v364
        %v367 = vadd.s32 %v358, %v365
        %368 = vset.pattern.permute.xlu0 11
        %369 = vperm.xlu0 %368, %v270
        %v370 = vpop.permute.xlu0 %369
        %vm371 = vcmp.eq.s32.totalorder %v370, %v264
        %vm372 = vcmp.eq.s32.totalorder %v370, %v265
        %v373 = vsel %vm371, 1, 0
        %v374 = vsel %vm372, 1, 0
        %v375 = vadd.s32 %v366, %v373
        %v376 = vadd.s32 %v367, %v374
        %377 = vset.pattern.permute.xlu0 12
        %378 = vperm.xlu0 %377, %v270
        %v379 = vpop.permute.xlu0 %378
        %vm380 = vcmp.eq.s32.totalorder %v379, %v264
        %vm381 = vcmp.eq.s32.totalorder %v379, %v265
        %v382 = vsel %vm380, 1, 0
        %v383 = vsel %vm381, 1, 0
        %v384 = vadd.s32 %v375, %v382
        %v385 = vadd.s32 %v376, %v383
        %386 = vset.pattern.permute.xlu0 13
        %387 = vperm.xlu0 %386, %v270
        %v388 = vpop.permute.xlu0 %387
        %vm389 = vcmp.eq.s32.totalorder %v388, %v264
        %vm390 = vcmp.eq.s32.totalorder %v388, %v265
        %v391 = vsel %vm389, 1, 0
        %v392 = vsel %vm390, 1, 0
        %v393 = vadd.s32 %v384, %v391
        %v394 = vadd.s32 %v385, %v392
        %395 = vset.pattern.permute.xlu0 14
        %396 = vperm.xlu0 %395, %v270
        %v397 = vpop.permute.xlu0 %396
        %vm398 = vcmp.eq.s32.totalorder %v397, %v264
        %vm399 = vcmp.eq.s32.totalorder %v397, %v265
        %v400 = vsel %vm398, 1, 0
        %v401 = vsel %vm399, 1, 0
        %v402 = vadd.s32 %v393, %v400
        %v403 = vadd.s32 %v394, %v401
        %404 = vset.pattern.permute.xlu0 15
        %405 = vperm.xlu0 %404, %v270
        %v406 = vpop.permute.xlu0 %405
        %vm407 = vcmp.eq.s32.totalorder %v406, %v264
        %vm408 = vcmp.eq.s32.totalorder %v406, %v265
        %v409 = vsel %vm407, 1, 0
        %v410 = vsel %vm408, 1, 0
        %v411 = vadd.s32 %v402, %v409
        %v412 = vadd.s32 %v403, %v410
        %v413 = vld [vmem:[#allocation8] sm:$0xff]
        %v414 = vcvt.s32.f32 %v411
        %v415 = vcvt.s32.f32 %v412
        %v416 = vpack.c.bf16 %v414, %v414
        %v417 = vpack.c.bf16 %v415, %v415
        %v418 = vld [vmem:[%s231] sm:$0xf]
        %v419 = vld [vmem:[%s231 + $0x4] sm:$0xf]
        %v420 = vld [vmem:[%s231 + $0x8] sm:$0xf]
        %v421 = vld [vmem:[%s231 + $0xc] sm:$0xf]
        %v422 = vld [vmem:[%s231 + $0x10] sm:$0xf]
        %v423 = vld [vmem:[%s231 + $0x14] sm:$0xf]
        %v424 = vld [vmem:[%s231 + $0x18] sm:$0xf]
        %v425 = vld [vmem:[%s231 + $0x1c] sm:$0xf]
        %v426 = vld [vmem:[%s231 + $0x20] sm:$0xf]
        %v427 = vld [vmem:[%s231 + $0x24] sm:$0xf]
        %v428 = vld [vmem:[%s231 + $0x28] sm:$0xf]
        %v429 = vld [vmem:[%s231 + $0x2c] sm:$0xf]
        %v430 = vld [vmem:[%s231 + $0x30] sm:$0xf]
        %v431 = vld [vmem:[%s231 + $0x34] sm:$0xf]
        %v432 = vld [vmem:[%s231 + $0x38] sm:$0xf]
        %v433 = vld [vmem:[%s231 + $0x3c] sm:$0xf]
        %v434 = vld [vmem:[%s231 + $0x40] sm:$0xf]
        %v435 = vld [vmem:[%s231 + $0x44] sm:$0xf]
        %v436 = vld [vmem:[%s231 + $0x48] sm:$0xf]
        %v437 = vld [vmem:[%s231 + $0x4c] sm:$0xf]
        %v438 = vld [vmem:[%s231 + $0x50] sm:$0xf]
        %v439 = vld [vmem:[%s231 + $0x54] sm:$0xf]
        %v440 = vld [vmem:[%s231 + $0x58] sm:$0xf]
        %v441 = vld [vmem:[%s231 + $0x5c] sm:$0xf]
        %v442 = vld [vmem:[%s231 + $0x60] sm:$0xf]
        %v443 = vld [vmem:[%s231 + $0x64] sm:$0xf]
        %v444 = vld [vmem:[%s231 + $0x68] sm:$0xf]
        %v445 = vld [vmem:[%s231 + $0x6c] sm:$0xf]
        %v446 = vld [vmem:[%s231 + $0x70] sm:$0xf]
        %v447 = vld [vmem:[%s231 + $0x74] sm:$0xf]
        %v448 = vld [vmem:[%s231 + $0x78] sm:$0xf]
        %v449 = vld [vmem:[%s231 + $0x7c] sm:$0xf]
        %v482 = vunpack.c.l.b16 %v418
        %v483 = vunpack.c.l.b16 %v419
        %v484 = vunpack.c.l.b16 %v420
        %v485 = vunpack.c.l.b16 %v421
        %v486 = vunpack.c.l.b16 %v422
        %v487 = vunpack.c.l.b16 %v423
        %v488 = vunpack.c.l.b16 %v424
        %v489 = vunpack.c.l.b16 %v425
        %v490 = vunpack.c.l.b16 %v426
        %v491 = vunpack.c.l.b16 %v427
        %v492 = vunpack.c.l.b16 %v428
        %v493 = vunpack.c.l.b16 %v429
        %v494 = vunpack.c.l.b16 %v430
        %v495 = vunpack.c.l.b16 %v431
        %v496 = vunpack.c.l.b16 %v432
        %v497 = vunpack.c.l.b16 %v433
        %v498 = vunpack.c.l.b16 %v434
        %v499 = vunpack.c.l.b16 %v435
        %v500 = vunpack.c.l.b16 %v436
        %v501 = vunpack.c.l.b16 %v437
        %v502 = vunpack.c.l.b16 %v438
        %v503 = vunpack.c.l.b16 %v439
        %v504 = vunpack.c.l.b16 %v440
        %v505 = vunpack.c.l.b16 %v441
        %v506 = vunpack.c.l.b16 %v442
        %v507 = vunpack.c.l.b16 %v443
        %v508 = vunpack.c.l.b16 %v444
        %v509 = vunpack.c.l.b16 %v445
        %v510 = vunpack.c.l.b16 %v446
        %v511 = vunpack.c.l.b16 %v447
        %v512 = vunpack.c.l.b16 %v448
        %v513 = vunpack.c.l.b16 %v449
        %v514 = vpack.c.b16 %v483, %v482
        %v515 = vpack.c.b16 %v485, %v484
        %v516 = vpack.c.b16 %v487, %v486
        %v517 = vpack.c.b16 %v489, %v488
        %v518 = vpack.c.b16 %v491, %v490
        %v519 = vpack.c.b16 %v493, %v492
        %v520 = vpack.c.b16 %v495, %v494
        %v521 = vpack.c.b16 %v497, %v496
        %v522 = vpack.c.b16 %v499, %v498
        %v523 = vpack.c.b16 %v501, %v500
        %v524 = vpack.c.b16 %v503, %v502
        %v525 = vpack.c.b16 %v505, %v504
        %v526 = vpack.c.b16 %v507, %v506
        %v527 = vpack.c.b16 %v509, %v508
        %v528 = vpack.c.b16 %v511, %v510
        %v529 = vpack.c.b16 %v513, %v512
        %546 = vmatprep.subr.bf16.mxu0 0
        %547 = vmatpush1.bf16.msra.mxu0 %v521
        %548 = vmatprep.subr.bf16.mxu0 0
        %549 = vmatpush1.bf16.msra.mxu0 %v520
        %550 = vmatprep.subr.bf16.mxu0 0
        %551 = vmatpush1.bf16.msra.mxu0 %v519
        %552 = vmatprep.subr.bf16.mxu0 0
        %553 = vmatpush1.bf16.msra.mxu0 %v518
        %554 = vmatprep.subr.bf16.mxu0 0
        %555 = vmatpush1.bf16.msra.mxu0 %v517
        %556 = vmatprep.subr.bf16.mxu0 0
        %557 = vmatpush1.bf16.msra.mxu0 %v516
        %558 = vmatprep.subr.bf16.mxu0 0
        %559 = vmatpush1.bf16.msra.mxu0 %v515
        %560 = vmatprep.subr.bf16.mxu0 0
        %561 = vmatpush1.bf16.msra.mxu0 %v514
        %562 = vmatprep.subr.bf16.mxu0 0
        %563 = vmatpush2.bf16.msra.mxu0 %v529
        %564 = vmatprep.subr.bf16.mxu0 0
        %565 = vmatpush2.bf16.msra.mxu0 %v528
        %566 = vmatprep.subr.bf16.mxu0 0
        %567 = vmatpush2.bf16.msra.mxu0 %v527
        %568 = vmatprep.subr.bf16.mxu0 0
        %569 = vmatpush2.bf16.msra.mxu0 %v526
        %570 = vmatprep.subr.bf16.mxu0 0
        %571 = vmatpush2.bf16.msra.mxu0 %v525
        %572 = vmatprep.subr.bf16.mxu0 0
        %573 = vmatpush2.bf16.msra.mxu0 %v524
        %574 = vmatprep.subr.bf16.mxu0 0
        %575 = vmatpush2.bf16.msra.mxu0 %v523
        %576 = vmatprep.subr.bf16.mxu0 0
        %577 = vmatpush2.bf16.msra.mxu0 %v522
        %578 = vmatprep.mubr.bf16.mxu0 %v417
        %579 = vmatmul.mubr.bf16.gmra.mxu0 %v416
        %v580 = vpop.f32.mrf.mxu0
        %v581 = vadd.f32 0.0, %v580
        %v582 = vpop.f32.mrf.mxu0
        %v583 = vpop.f32.mrf.mxu0
        %v584 = vpop.f32.mrf.mxu0
        %585 = vdwg.mxu0
        %v586 = vadd.f32 %v413, %v581
        %587 = vst [vmem:[#allocation8] sm:$0xff] %v586
        %p588 = scmp.eq.s32.totalorder %s25, 7
        // Predicated region
        $region53: #{tpu_custom_call.1} parent=35 // pred_check
          %p589 = pneg %p588
        $region54: #{tpu_custom_call.1} parent=35 // pred_check_branch
          %591 = sbr.rel (%p589) target = $region56
        $region55: #{tpu_custom_call.1} parent=35 // pred_region
          %v592 = vld [vmem:[#allocation2] sm:$0xff]
          %vm593 = vcmp.ne.s32.totalorder %v592, 0
          %v594 = vsel %vm593, 1, 0
          %v595 = vcvt.s32.f32 %v594
          %vm596 = vcmask 130048
          %v597 = vsel %vm596, %v595, 0.0
          %598 = vadd.xlane.f32.xlu0 %v597
          %v599 = vpop.xlane.xlu0 %598
          %v600 = vmax.f32 %v599, 1.0
          %v601 = vrcp.pop %v600
          %v602 = vld [vmem:[#allocation8] sm:$0xff]
          %v603 = vmul.f32 %v602, %v601
          %v604 = vpack.c.bf16 %v603, %v603
          %v605 = vld [vmem:[#allocation7] sm:$0xf]
          %v606 = vld [vmem:[#allocation7 + $0x4] sm:$0xf]
          %v607 = vld [vmem:[#allocation7 + $0x8] sm:$0xf]
          %v608 = vld [vmem:[#allocation7 + $0xc] sm:$0xf]
          %v609 = vld [vmem:[#allocation7 + $0x10] sm:$0xf]
          %v610 = vld [vmem:[#allocation7 + $0x14] sm:$0xf]
          %v611 = vld [vmem:[#allocation7 + $0x18] sm:$0xf]
          %v612 = vld [vmem:[#allocation7 + $0x1c] sm:$0xf]
          %v613 = vld [vmem:[#allocation7 + $0x20] sm:$0xf]
          %v614 = vld [vmem:[#allocation7 + $0x24] sm:$0xf]
          %v615 = vld [vmem:[#allocation7 + $0x28] sm:$0xf]
          %v616 = vld [vmem:[#allocation7 + $0x2c] sm:$0xf]
          %v617 = vld [vmem:[#allocation7 + $0x30] sm:$0xf]
          %v618 = vld [vmem:[#allocation7 + $0x34] sm:$0xf]
          %v619 = vld [vmem:[#allocation7 + $0x38] sm:$0xf]
          %v620 = vld [vmem:[#allocation7 + $0x3c] sm:$0xf]
          %v621 = vld [vmem:[%s3] sm:$0x1]
          %v623 = vlaneseq
          %v624 = vshrl.u32 %v623, 7
          %v625 = vsub.s32 0, %v624
          %v626 = vrot.slane %v621, %v625
          %v644 = vunpack.c.l.b16 %v605
          %v645 = vunpack.c.l.b16 %v606
          %v646 = vunpack.c.l.b16 %v607
          %v647 = vunpack.c.l.b16 %v608
          %v648 = vunpack.c.l.b16 %v609
          %v649 = vunpack.c.l.b16 %v610
          %v650 = vunpack.c.l.b16 %v611
          %v651 = vunpack.c.l.b16 %v612
          %v652 = vunpack.c.l.b16 %v613
          %v653 = vunpack.c.l.b16 %v614
          %v654 = vunpack.c.l.b16 %v615
          %v655 = vunpack.c.l.b16 %v616
          %v656 = vunpack.c.l.b16 %v617
          %v657 = vunpack.c.l.b16 %v618
          %v658 = vunpack.c.l.b16 %v619
          %v659 = vunpack.c.l.b16 %v620
          %v660 = vpack.c.b16 %v645, %v644
          %v661 = vpack.c.b16 %v647, %v646
          %v662 = vpack.c.b16 %v649, %v648
          %v663 = vpack.c.b16 %v651, %v650
          %v664 = vpack.c.b16 %v653, %v652
          %v665 = vpack.c.b16 %v655, %v654
          %v666 = vpack.c.b16 %v657, %v656
          %v667 = vpack.c.b16 %v659, %v658
          %676 = vmatprep.subr.bf16.mxu0 0
          %677 = vmatpush1.bf16.msra.mxu0 %v667
          %678 = vmatprep.subr.bf16.mxu0 0
          %679 = vmatpush1.bf16.msra.mxu0 %v666
          %680 = vmatprep.subr.bf16.mxu0 0
          %681 = vmatpush1.bf16.msra.mxu0 %v665
          %682 = vmatprep.subr.bf16.mxu0 0
          %683 = vmatpush1.bf16.msra.mxu0 %v664
          %684 = vmatprep.subr.bf16.mxu0 0
          %685 = vmatpush1.bf16.msra.mxu0 %v663
          %686 = vmatprep.subr.bf16.mxu0 0
          %687 = vmatpush1.bf16.msra.mxu0 %v662
          %688 = vmatprep.subr.bf16.mxu0 0
          %689 = vmatpush1.bf16.msra.mxu0 %v661
          %690 = vmatprep.subr.bf16.mxu0 0
          %691 = vmatpush1.bf16.msra.mxu0 %v660
          %692 = vmatprep.subr.bf16.mxu0 0
          %693 = vmatpush2.bf16.msra.mxu0 0
          %694 = vmatprep.subr.bf16.mxu0 0
          %695 = vmatpush2.bf16.msra.mxu0 0
          %696 = vmatprep.subr.bf16.mxu0 0
          %697 = vmatpush2.bf16.msra.mxu0 0
          %698 = vmatprep.subr.bf16.mxu0 0
          %699 = vmatpush2.bf16.msra.mxu0 0
          %700 = vmatprep.subr.bf16.mxu0 0
          %701 = vmatpush2.bf16.msra.mxu0 0
          %702 = vmatprep.subr.bf16.mxu0 0
          %703 = vmatpush2.bf16.msra.mxu0 0
          %704 = vmatprep.subr.bf16.mxu0 0
          %705 = vmatpush2.bf16.msra.mxu0 0
          %706 = vmatprep.subr.bf16.mxu0 0
          %707 = vmatpush2.bf16.msra.mxu0 0
          %708 = vmatprep.mubr.bf16.mxu0 0
          %709 = vmatmul.mubr.bf16.gmra.mxu0 %v604
          %v710 = vpop.f32.mrf.mxu0
          %v711 = vadd.f32 %v626, %v710
          %v712 = vpop.f32.mrf.mxu0
          %v713 = vpop.f32.mrf.mxu0
          %v714 = vpop.f32.mrf.mxu0
          %715 = vdwg.mxu0
          %716 = vst [vmem:[#allocation8] sm:$0xff] %v711
        $region56: #{tpu_custom_call.1} parent=35 // pred_fallthru
          _
        // Predicated region
        $region57: #{tpu_custom_call.1} parent=35 // pred_check
          %p717 = pneg %p144
        $region58: #{tpu_custom_call.1} parent=35 // pred_check_branch
          %719 = sbr.rel (%p717) target = $region60
        $region59: #{tpu_custom_call.1} parent=35 // pred_region
          %s721 = ssub.s32 128, 128
          %722 = vsyncadd [#allocation4], %s721
          %s723 = smul.addr %s24, 128
          %s724 = scalar_lea.hbm %s4, %s723
          %s726 = sshll.u32 [#allocation8], 4
          %s727 = int_to_ptr.vmem [resolvable:$true] %s726
          %729 = dma.vmem_to_hbm [thread:$0]  %s727, 128, %s724, [#allocation4]
        $region60: #{tpu_custom_call.1} parent=35 // pred_fallthru
          _
        // Predicated region
        $region61: #{tpu_custom_call.1} parent=35 // pred_check
          %p730 = pneg %p144
        $region62: #{tpu_custom_call.1} parent=35 // pred_check_branch
          %732 = sbr.rel (%p730) target = $region64
        $region63: #{tpu_custom_call.1} parent=35 // pred_region
          %733 = dma.done [#allocation4], 128
        $region64: #{tpu_custom_call.1} parent=35 // pred_fallthru
          _
      $region36: #{tpu_custom_call.1} parent=5 // pred_fallthru
        _
      %p734 = scmp.le.s32.totalorder 2, %s15
      // Predicated region
      $region65: #{tpu_custom_call.1} parent=5 // pred_check
        %p735 = pneg %p734
      $region66: #{tpu_custom_call.1} parent=5 // pred_check_branch
        %737 = sbr.rel (%p735) target = $region68
      $region67: #{tpu_custom_call.1} parent=5 // pred_region
        %s738 = ssub.s32 %s15, 2
      $region68: #{tpu_custom_call.1} parent=5 // pred_fallthru
        _
    $region6: #{tpu_custom_call.1} parent=1 // loop_footer
      %s19 = sadd.s32 1, %s15
    $region7: #{tpu_custom_call.1} parent=1 // loop_footer_branch
      %14 = sbr.rel target = $region3
    $region8: #{tpu_custom_call.1} parent=1 // loop_exit
      _
    %739 = vsyncpa [#allocation3], 1
    %s740 = scalar_lea.sflag [#allocation3], 1
    %741 = vsyncpa %s740, 1
    %742 = vsyncpa [#allocation6], 1
    %s743 = scalar_lea.sflag [#allocation6], 1
    %744 = vsyncpa %s743, 1
    %745 = vsyncpa [#allocation4], 1
    %s746 = scalar_lea.sflag [#allocation4], 1
    %747 = vsyncpa %s746, 1

</llo_original>
